<compile_context>
chip_gen: v6e
topology: v6e:2x2x1
jax: 0.10.0
libtpu: 0.0.40
codegen_flags: <defaults>
</compile_context>

<pallas_src>
import jax
import jax.numpy as jnp
from jax.experimental import pallas as pl
from jax.experimental.pallas import tpu as pltpu

_TILE_BUDGET_BYTES = 2 * 1024 * 1024  # per x block (double-buffered -> ~4 MiB)


def _attention_kernel(w_ref, x_ref, o_ref, acc_ref):
    # w_ref:   (1, CK)  VMEM  (channel-tile slice of the weights)
    # x_ref:   (CK, TS) VMEM  (batch dim squeezed by BlockSpec)
    # o_ref:   (1, TS)  VMEM  (same block across the k axis -> resident)
    # acc_ref: (1, TS)  f32 VMEM scratch accumulator
    k = pl.program_id(2)

    @pl.when(k == 0)
    def _():
        acc_ref[...] = jnp.zeros_like(acc_ref)

    scores = jax.nn.sigmoid(w_ref[...].astype(jnp.float32))  # (1, CK) -- EUP
    x = x_ref[...]                                            # (CK, TS)
    ck = x.shape[0]
    if ck >= 128:
        # Large channel block: contraction on the MXU (frees the VPU).
        acc_ref[...] += jnp.dot(
            scores.astype(x.dtype), x, preferred_element_type=jnp.float32
        )
    else:
        # Small channel block: broadcast-multiply + channel reduce on the VPU.
        acc_ref[...] += jnp.sum(
            x.astype(jnp.float32) * scores.reshape(ck, 1), axis=0, keepdims=True
        )

    @pl.when(k == pl.num_programs(2) - 1)
    def _():
        o_ref[...] = acc_ref[...].astype(o_ref.dtype)


def _pick_lane_tile(c, s, itemsize):
    """Lane tile along the fused H*W axis.

    Multiple of 128 (or the full extent), evenly divides s, and targets
    ~_TILE_BUDGET_BYTES of x per block (but at least 512 lanes when legal).
    """
    if s % 128 != 0:
        return s  # full-extent block is always legal
    budget_lanes = max(512, _TILE_BUDGET_BYTES // max(1, c * itemsize))
    budget_lanes = (budget_lanes // 128) * 128
    ts = min(s, budget_lanes)
    while ts > 128 and s % ts != 0:
        ts -= 128
    if s % ts != 0:
        ts = s
    return ts


def _pick_channel_tile(c, ts, itemsize):
    """Channel tile: full C if it fits the budget, else the largest
    multiple-of-8 divisor of C that keeps the x block within budget."""
    if c * ts * itemsize <= _TILE_BUDGET_BYTES or c % 8 != 0:
        return c
    max_ck = max(8, _TILE_BUDGET_BYTES // max(1, ts * itemsize))
    ck = (max_ck // 8) * 8
    while ck >= 8:
        if c % ck == 0:
            return ck
        ck -= 8
    return c


def attention_module_forward(x, weight):
    """x: (N, C, H, W); weight: (1, C, 1, 1) -> returns (N, 1, H, W)."""
    n, c, h, w = x.shape
    s = h * w
    x3 = x.reshape(n, c, s)          # lane-dense last axis (free reshape)
    w2d = weight.reshape(1, c)

    itemsize = x.dtype.itemsize
    ts = _pick_lane_tile(c, s, itemsize)
    ck = _pick_channel_tile(c, ts, itemsize)
    grid = (n, s // ts, pl.cdiv(c, ck))  # batch x lane-tiles x channel-tiles

    out3 = pl.pallas_call(
        _attention_kernel,
        out_shape=jax.ShapeDtypeStruct((n, 1, s), x.dtype),
        grid_spec=pltpu.PrefetchScalarGridSpec(
            num_scalar_prefetch=0,
            grid=grid,
            in_specs=[
                # weight: channel-tile k (constant across i, j -> resident)
                pl.BlockSpec((1, ck), lambda i, j, k: (0, k)),
                # x: one batch element (squeezed), channel tile k, lane tile j
                pl.BlockSpec((None, ck, ts), lambda i, j, k: (i, k, j)),
            ],
            # same output block across k -> stays resident for the reduction
            out_specs=pl.BlockSpec((None, 1, ts), lambda i, j, k: (i, 0, j)),
            scratch_shapes=[pltpu.VMEM((1, ts), jnp.float32)],
        ),
        compiler_params=pltpu.CompilerParams(
            dimension_semantics=("parallel", "parallel", "arbitrary"),
        ),
    )(w2d, x3)

    return out3.reshape(n, 1, h, w)


if __name__ == "__main__":
    key = jax.random.PRNGKey(0)
    N, C, H, W = 2, 4, 16, 16

    # Deterministic inputs
    x = jax.random.normal(key, (N, C, H, W), dtype=jnp.float32)
    # Module init: weight = ones(1, C, 1, 1)
    weight = jnp.ones((1, C, 1, 1), dtype=jnp.float32)

    out = attention_module_forward(x, weight)
    out = jax.block_until_ready(out)

    # Reference check (plain JAX, mirrors PyTorch forward exactly)
    ref = jnp.sum(x * jax.nn.sigmoid(weight), axis=1, keepdims=True)
    assert out.shape == (N, 1, H, W), out.shape
    assert jnp.allclose(out, ref, atol=1e-5, rtol=1e-5), "mismatch vs reference"

    print("KERNEL_OK")
</pallas_src>

<mosaic_0001>
module attributes {stable_mosaic.version = 11 : i64} {
  func.func @_attention_kernel(%arg0: i32, %arg1: i32, %arg2: i32, %arg3: memref<1x4xf32, #tpu.memory_space<vmem>>, %arg4: memref<1x4x256xf32, #tpu.memory_space<vmem>>, %arg5: memref<1x1x256xf32, #tpu.memory_space<vmem>>, %arg6: memref<1x256xf32, #tpu.memory_space<vmem>>) attributes {dimension_semantics = [#tpu.dimension_semantics<parallel>, #tpu.dimension_semantics<parallel>, #tpu.dimension_semantics<arbitrary>], iteration_bounds = array<i64: 2, 1, 1>, scalar_prefetch = 0 : i64, scratch_operands = 1 : i64, tpu.core_type = #tpu.core_type<tc>, window_params = [{transform_indices = @transform_0, window_bounds = array<i64: 1, 4>}, {transform_indices = @transform_1, window_bounds = array<i64: 1, 4, 256>}, {transform_indices = @transform_2, window_bounds = array<i64: 1, 1, 256>}]} {
    %c0_i32 = arith.constant 0 : i32
    %0 = arith.cmpi eq, %arg2, %c0_i32 : i32
    %1 = arith.extui %0 : i1 to i32
    %c0_i32_0 = arith.constant 0 : i32
    %2 = arith.cmpi ne, %1, %c0_i32_0 : i32
    scf.if %2 {
      %cst_12 = arith.constant 0.000000e+00 : f32
      %22 = vector.broadcast %cst_12 : f32 to vector<1x256xf32>
      %c0_13 = arith.constant 0 : index
      %c0_14 = arith.constant 0 : index
      %23 = vector.load %arg6[%c0_13, %c0_14] : memref<1x256xf32, #tpu.memory_space<vmem>>, vector<1x256xf32>
      tpu.vector_store %arg6[%c0_13, %c0_14], %22 {strides = array<i32>} : memref<1x256xf32, #tpu.memory_space<vmem>>, vector<1x256xf32>,
    } else {
    }
    %c0 = arith.constant 0 : index
    %c0_1 = arith.constant 0 : index
    %3 = vector.load %arg3[%c0, %c0_1] : memref<1x4xf32, #tpu.memory_space<vmem>>, vector<1x4xf32>
    %4 = arith.negf %3 : vector<1x4xf32>
    %5 = math.exp %4 : vector<1x4xf32>
    %cst = arith.constant 1.000000e+00 : f32
    %6 = vector.broadcast %cst : f32 to vector<1x4xf32>
    %7 = arith.addf %6, %5 : vector<1x4xf32>
    %8 = arith.divf %6, %7 : vector<1x4xf32>
    %c0_2 = arith.constant 0 : index
    %c0_3 = arith.constant 0 : index
    %c0_4 = arith.constant 0 : index
    %9 = vector.load %arg4[%c0_2, %c0_3, %c0_4] : memref<1x4x256xf32, #tpu.memory_space<vmem>>, vector<1x4x256xf32>
    %10 = vector.shape_cast %9 : vector<1x4x256xf32> to vector<4x256xf32>
    %c0_5 = arith.constant 0 : index
    %c0_6 = arith.constant 0 : index
    %11 = vector.load %arg6[%c0_5, %c0_6] : memref<1x256xf32, #tpu.memory_space<vmem>>, vector<1x256xf32>
    %12 = vector.shape_cast %8 : vector<1x4xf32> to vector<4x1xf32>
    %13 = vector.broadcast %12 : vector<4x1xf32> to vector<4x256xf32>
    %14 = arith.mulf %10, %13 : vector<4x256xf32>
    %cst_7 = arith.constant dense<0.000000e+00> : vector<256xf32>
    %15 = vector.multi_reduction <add>, %14, %cst_7 [0] : vector<4x256xf32> to vector<256xf32>
    %16 = vector.shape_cast %15 : vector<256xf32> to vector<1x256xf32>
    %17 = arith.addf %11, %16 : vector<1x256xf32>
    %c0_8 = arith.constant 0 : index
    %c0_9 = arith.constant 0 : index
    %18 = vector.load %arg6[%c0_8, %c0_9] : memref<1x256xf32, #tpu.memory_space<vmem>>, vector<1x256xf32>
    tpu.vector_store %arg6[%c0_8, %c0_9], %17 {strides = array<i32>} : memref<1x256xf32, #tpu.memory_space<vmem>>, vector<1x256xf32>,
    %c0_i32_10 = arith.constant 0 : i32
    %19 = arith.cmpi eq, %arg2, %c0_i32_10 : i32
    %20 = arith.extui %19 : i1 to i32
    %c0_i32_11 = arith.constant 0 : i32
    %21 = arith.cmpi ne, %20, %c0_i32_11 : i32
    scf.if %21 {
      %c0_12 = arith.constant 0 : index
      %c0_13 = arith.constant 0 : index
      %22 = vector.load %arg6[%c0_12, %c0_13] : memref<1x256xf32, #tpu.memory_space<vmem>>, vector<1x256xf32>
      %c0_14 = arith.constant 0 : index
      %c0_15 = arith.constant 0 : index
      %c0_16 = arith.constant 0 : index
      %23 = vector.load %arg5[%c0_14, %c0_15, %c0_16] : memref<1x1x256xf32, #tpu.memory_space<vmem>>, vector<1x1x256xf32>
      %24 = vector.shape_cast %23 : vector<1x1x256xf32> to vector<1x256xf32>
      %25 = vector.shape_cast %22 : vector<1x256xf32> to vector<1x1x256xf32>
      tpu.vector_store %arg5[%c0_14, %c0_15, %c0_16], %25 {strides = array<i32>} : memref<1x1x256xf32, #tpu.memory_space<vmem>>, vector<1x1x256xf32>,
    } else {
    }
    return
  }
  func.func @transform_0(%arg0: i32, %arg1: i32, %arg2: i32) -> (i32, i32) {
    %c0_i32 = arith.constant 0 : i32
    %c0_i32_0 = arith.constant 0 : i32
    return %c0_i32, %arg2 : i32, i32
  }
  func.func @transform_1(%arg0: i32, %arg1: i32, %arg2: i32) -> (i32, i32, i32) {
    %c0_i32 = arith.constant 0 : i32
    return %arg0, %arg2, %arg1 : i32, i32, i32
  }
  func.func @transform_2(%arg0: i32, %arg1: i32, %arg2: i32) -> (i32, i32, i32) {
    %c0_i32 = arith.constant 0 : i32
    %c0_i32_0 = arith.constant 0 : i32
    return %arg0, %c0_i32, %arg1 : i32, i32, i32
  }
}

</mosaic_0001>

<llo_original>
// kernel: tpu_custom_call.1
$region0: #{tpu_custom_call.1}
  #allocation0 [shape = 'u32[]', space=smem, size = 0x4, offset = 0x4, fixed_abs, tag = 'smem constant byte address 0x4 - core index']
  #allocation1 [shape = 'u32[144,128]{1,0:T(1,128)}', space=vmem, size = 0x12000, scoped, tag = 'internal scratch']
  #allocation2 [shape = 'f32[1,256]{1,0:T(1,128)}', space=vmem, size = 0x400, scoped, tag = 'scratch operand']
  %s0 = inlined_call_operand.hbm [shape: f32[1,4], index: 0, kind: input, shape index: {}]
  %s1 = inlined_call_operand.hbm [shape: f32[2,4,256], index: 1, kind: input, shape index: {}]
  %s2 = inlined_call_operand.hbm [shape: f32[2,1,256], index: 2, kind: output, shape index: {}]
  %s3 = sld [smem:[#allocation0]]
  $region57: #{tpu_custom_call.1} parent=0
    _
  %s5 = ssub.s32 1, %s3
  %s6 = scalar_select 0, %s5, %s3
  $region1: #{tpu_custom_call.1} parent=0
    #allocation3 [shape = 'u8[512]{0}', space=vmem, size = 0x400, scoped, tag = 'input window, operand 0, single buffered']
    #allocation4 [shape = 's32[2]{0}', space=sflag, size = 0x8, scoped, tag = 'scoped memory for tpu_custom_call.1']
    #allocation5 [shape = 's32[2]{0}', space=sflag, size = 0x8, scoped, tag = 'scoped memory for tpu_custom_call.1']
    #allocation6 [shape = 'u8[8192]{0}', space=vmem, size = 0x2000, scoped, tag = 'input window, operand 1']
    #allocation7 [shape = 's32[2]{0}', space=sflag, size = 0x8, scoped, tag = 'scoped memory for tpu_custom_call.1']
    #allocation8 [shape = 'u8[2048]{0}', space=vmem, size = 0x800, scoped, tag = 'output window, operand 0']
    %7 = vsyncpa [#allocation4], 0
    %8 = vsyncpa [#allocation7], 0
    %s9 = scalar_lea.sflag [#allocation7], 1
    %10 = vsyncpa %s9, 0
    %11 = vsyncpa [#allocation5], 0
    %s12 = scalar_lea.sflag [#allocation5], 1
    %13 = vsyncpa %s12, 0
    loop: start=0, step=1, limit=4
    $region2: #{tpu_custom_call.1} parent=1 // loop_pre_header
      _
    $region3: #{tpu_custom_call.1} parent=1 // loop_header
      %s15 = sphi 0, %s19
      %p16 = scmp.ge.s32.totalorder %s15, 4
      %s22 = sphi 0, %s41
      %s23 = sphi 0, %s37
      %s24 = sphi 0, %s33
      %s25 = sphi 0, %s22
      %s26 = sphi 0, %s23
      %s27 = sphi 0, %s24
      %s28 = sphi 0, %s25
      %s29 = sphi 0, %s26
      %s30 = sphi 0, %s27
      %s44 = sphi 0, %s46
      %s47 = sphi 0, %s44
      %s48 = sphi 0, %s47
      %s64 = sphi 0, %s48
      %s74 = sphi 0, %s76
      %s77 = sphi 0, %s74
      %s78 = sphi 0, %s77
      %s94 = sphi 0, %s78
      %s102 = sphi 0, %s104
      %s105 = sphi 0, %s102
      %s106 = sphi 0, %s105
      %s122 = sphi 0, %s106
    $region4: #{tpu_custom_call.1} parent=1 // loop_header_branch
      %18 = sbr.rel (%p16) target = $region8
    $region5: #{tpu_custom_call.1} parent=1 // loop_body
      %s20 = ssub.s32 %s15, 1
      %s21 = ssub.s32 %s15, 2
      %s31 = sadd.s32 1, %s24
      %p32 = scmp.ge.s32.totalorder %s31, 1
      %s33 = scalar_select %p32, 0, %s31
      %s34 = sadd.s32 1, %s23
      %s35 = scalar_select %p32, %s34, %s23
      %p36 = scmp.ge.s32.totalorder %s35, 1
      %s37 = scalar_select %p36, 0, %s35
      %s38 = sadd.s32 1, %s22
      %s39 = scalar_select %p36, %s38, %s22
      %p40 = scmp.ge.s32.totalorder %s39, 2
      %s41 = scalar_select %p40, 0, %s39
      %s42 = ssub.s32 %s24, %s33
      %p43 = scmp.eq.s32.totalorder %s42, 0
      %s45 = sadd.s32 %s44, 1
      %s46 = scalar_select %p43, %s44, %s45
      %p49 = pneg %p43
      %p50 = scmp.eq.s32.totalorder %s15, 1
      %p51 = por %p49, %p50
      %p52 = scmp.ne.s32.totalorder %s44, %s47
      %p53 = scmp.eq.s32.totalorder %s15, 0
      %p54 = por %p52, %p53
      %p55 = scmp.ne.s32.totalorder %s44, %s47
      %p56 = scmp.eq.s32.totalorder %s20, 1
      %p57 = por %p55, %p56
      %p58 = scmp.ne.s32.totalorder %s47, %s48
      %p59 = scmp.eq.s32.totalorder %s20, 0
      %p60 = por %p58, %p59
      %p61 = scmp.ne.s32.totalorder %s47, %s48
      %p62 = scmp.eq.s32.totalorder %s21, 1
      %p63 = por %p61, %p62
      %p65 = scmp.ne.s32.totalorder %s48, %s64
      %p66 = scmp.eq.s32.totalorder %s21, 0
      %p67 = por %p65, %p66
      %s68 = ssub.s32 %s22, %s41
      %s69 = ssub.s32 %s24, %s33
      %s70 = sor.u32 %s68, %s69
      %s71 = ssub.s32 %s23, %s37
      %s72 = sor.u32 %s70, %s71
      %p73 = scmp.eq.s32.totalorder %s72, 0
      %s75 = sadd.s32 %s74, 1
      %s76 = scalar_select %p73, %s74, %s75
      %p79 = pneg %p73
      %p80 = scmp.eq.s32.totalorder %s15, 1
      %p81 = por %p79, %p80
      %p82 = scmp.ne.s32.totalorder %s74, %s77
      %p83 = scmp.eq.s32.totalorder %s15, 0
      %p84 = por %p82, %p83
      %p85 = scmp.ne.s32.totalorder %s74, %s77
      %p86 = scmp.eq.s32.totalorder %s20, 1
      %p87 = por %p85, %p86
      %p88 = scmp.ne.s32.totalorder %s77, %s78
      %p89 = scmp.eq.s32.totalorder %s20, 0
      %p90 = por %p88, %p89
      %p91 = scmp.ne.s32.totalorder %s77, %s78
      %p92 = scmp.eq.s32.totalorder %s21, 1
      %p93 = por %p91, %p92
      %p95 = scmp.ne.s32.totalorder %s78, %s94
      %p96 = scmp.eq.s32.totalorder %s21, 0
      %p97 = por %p95, %p96
      %s98 = ssub.s32 %s22, %s41
      %s99 = ssub.s32 %s23, %s37
      %s100 = sor.u32 %s98, %s99
      %p101 = scmp.eq.s32.totalorder %s100, 0
      %s103 = sadd.s32 %s102, 1
      %s104 = scalar_select %p101, %s102, %s103
      %p107 = pneg %p101
      %p108 = scmp.eq.s32.totalorder %s15, 1
      %p109 = por %p107, %p108
      %p110 = scmp.ne.s32.totalorder %s102, %s105
      %p111 = scmp.eq.s32.totalorder %s15, 0
      %p112 = por %p110, %p111
      %p113 = scmp.ne.s32.totalorder %s102, %s105
      %p114 = scmp.eq.s32.totalorder %s20, 1
      %p115 = por %p113, %p114
      %p116 = scmp.ne.s32.totalorder %s105, %s106
      %p117 = scmp.eq.s32.totalorder %s20, 0
      %p118 = por %p116, %p117
      %p119 = scmp.ne.s32.totalorder %s105, %s106
      %p120 = scmp.eq.s32.totalorder %s21, 1
      %p121 = por %p119, %p120
      %p123 = scmp.ne.s32.totalorder %s106, %s122
      %p124 = scmp.eq.s32.totalorder %s21, 0
      %p125 = por %p123, %p124
      %p126 = scmp.le.s32.totalorder 1, %s15
      %p127 = scmp.lt.s32.totalorder %s15, 3
      %p128 = pnand %p126, %p127
      %p129 = pneg %p128
      // Predicated region
      $region9: #{tpu_custom_call.1} parent=5 // pred_check
        _
      $region10: #{tpu_custom_call.1} parent=5 // pred_check_branch
        %131 = sbr.rel (%p128) target = $region12
      $region11: #{tpu_custom_call.1} parent=5 // pred_region
        %s132 = ssub.s32 %s15, 1
        // Predicated region
        $region13: #{tpu_custom_call.1} parent=11 // pred_check
          %p133 = pneg %p60
        $region14: #{tpu_custom_call.1} parent=11 // pred_check_branch
          %135 = sbr.rel (%p133) target = $region16
        $region15: #{tpu_custom_call.1} parent=11 // pred_region
          %s137 = ssub.s32 16, 16
          %138 = vsyncadd [#allocation4], %s137
          %s139 = smul.addr %s27, 16
          %s140 = scalar_lea.hbm %s0, %s139
          %s142 = sshll.u32 [#allocation3], 4
          %s143 = int_to_ptr.vmem [resolvable:$true] %s142
          %145 = dma.hbm_to_vmem [thread:$0]  %s140, 16, %s143, [#allocation4]
        $region16: #{tpu_custom_call.1} parent=11 // pred_fallthru
          _
      $region12: #{tpu_custom_call.1} parent=5 // pred_fallthru
        _
      %p146 = scmp.lt.s32.totalorder %s15, 2
      // Predicated region
      $region17: #{tpu_custom_call.1} parent=5 // pred_check
        %p147 = pneg %p146
      $region18: #{tpu_custom_call.1} parent=5 // pred_check_branch
        %149 = sbr.rel (%p147) target = $region20
      $region19: #{tpu_custom_call.1} parent=5 // pred_region
        // Predicated region
        $region21: #{tpu_custom_call.1} parent=19 // pred_check
          %p150 = pneg %p84
        $region22: #{tpu_custom_call.1} parent=19 // pred_check_branch
          %152 = sbr.rel (%p150) target = $region24
        $region23: #{tpu_custom_call.1} parent=19 // pred_region
          %s153 = sand.u32 %s74, 1
          %s154 = scalar_lea.sflag [#allocation7], %s153
          %s155 = sand.u32 %s74, 1
          %s156 = smul.addr %s155, 8
          %s157 = scalar_lea.vmem [#allocation6], %s156
          %s158 = smul.u32 2, %s23
          %s160 = ssub.s32 128, 128
          %161 = vsyncadd %s154, %s160
          %s162 = smul.addr %s24, 2
          %s163 = sadd.s32 %s158, %s162
          %s164 = smul.addr %s22, 2
          %s165 = sadd.s32 %s163, %s164
          %s166 = smul.addr %s165, 64
          %s167 = scalar_lea.hbm %s1, %s166
          %s169 = sshll.u32 %s157, 4
          %s170 = int_to_ptr.vmem [resolvable:$true] %s169
          %172 = dma.hbm_to_vmem [thread:$0]  %s167, 128, %s170, %s154
        $region24: #{tpu_custom_call.1} parent=19 // pred_fallthru
          _
      $region20: #{tpu_custom_call.1} parent=5 // pred_fallthru
        _
      %p173 = scmp.le.s32.totalorder 1, %s15
      %p174 = scmp.lt.s32.totalorder %s15, 3
      %p175 = pnand %p173, %p174
      %p176 = pneg %p175
      // Predicated region
      $region25: #{tpu_custom_call.1} parent=5 // pred_check
        _
      $region26: #{tpu_custom_call.1} parent=5 // pred_check_branch
        %178 = sbr.rel (%p175) target = $region28
      $region27: #{tpu_custom_call.1} parent=5 // pred_region
        %s179 = ssub.s32 %s15, 1
        // Predicated region
        $region29: #{tpu_custom_call.1} parent=27 // pred_check
          %p180 = pneg %p60
        $region30: #{tpu_custom_call.1} parent=27 // pred_check_branch
          %182 = sbr.rel (%p180) target = $region32
        $region31: #{tpu_custom_call.1} parent=27 // pred_region
          %183 = dma.done [#allocation4], 16
        $region32: #{tpu_custom_call.1} parent=27 // pred_fallthru
          _
        %s184 = sand.u32 %s77, 1
        %s185 = scalar_lea.sflag [#allocation7], %s184
        %s186 = sand.u32 %s77, 1
        %s187 = smul.addr %s186, 8
        %s188 = scalar_lea.vmem [#allocation6], %s187
        // Predicated region
        $region33: #{tpu_custom_call.1} parent=27 // pred_check
          %p189 = pneg %p90
        $region34: #{tpu_custom_call.1} parent=27 // pred_check_branch
          %191 = sbr.rel (%p189) target = $region36
        $region35: #{tpu_custom_call.1} parent=27 // pred_region
          %192 = dma.done %s185, 128
        $region36: #{tpu_custom_call.1} parent=27 // pred_fallthru
          _
        %p193 = pneg %p60
        %p194 = pneg %p57
        %s195 = sand.u32 %s77, 1
        %s196 = scalar_lea.sflag [#allocation7], %s195
        %s197 = sand.u32 %s77, 1
        %s198 = smul.addr %s197, 8
        %s199 = scalar_lea.vmem [#allocation6], %s198
        %p200 = pneg %p90
        %p201 = pneg %p87
        %p202 = pneg %p118
        %p203 = pneg %p115
        %s204 = sand.u32 %s105, 1
        %s205 = scalar_lea.sflag [#allocation5], %s204
        %s206 = sand.u32 %s105, 1
        %s207 = smul.addr %s206, 2
        %s208 = scalar_lea.vmem [#allocation8], %s207
        %s209 = smul.u32 2, %s26
        %s210 = smul.u32 2, %s26
        %p211 = scmp.eq.s32.totalorder %s27, 0
        // Predicated region
        $region37: #{tpu_custom_call.1} parent=27 // pred_check
          %p212 = pneg %p211
        $region38: #{tpu_custom_call.1} parent=27 // pred_check_branch
          %214 = sbr.rel (%p212) target = $region40
        $region39: #{tpu_custom_call.1} parent=27 // pred_region
          %v215 = vlaneseq
          %vm216 = vcmp.ge.s32.totalorder %v215, 0
          %vm217 = vcmp.lt.s32.totalorder %v215, 256
          %vm218 = vmand %vm216, %vm217
          %219 = vst.msk [vmem:[#allocation2] sm:$0x3] %vm218, 0.0
        $region40: #{tpu_custom_call.1} parent=27 // pred_fallthru
          _
        %v220 = vld [vmem:[#allocation3] sm:$0x1]
        %v221 = vxor.u32 %v220, 2147483648
        %v222 = vmul.f32 %v221, 1.442695
        %v223 = vpow.pop %v222
        %v224 = vadd.f32 %v223, 1.0
        %v225 = vrcp.pop %v224
        %v226 = vmul.f32 1.0, %v225
        %v227 = vld [vmem:[%s188] sm:$0xff]
        %v228 = vld [vmem:[#allocation2] sm:$0x3]
        %v229 = vlaneseq
        %v230 = vshrl.u32 %v229, 7
        %v231 = vsub.s32 0, %v230
        %v232 = vrot.slane %v226, %v231
        %234 = vbcast.lane.b32.xlu0 %v232, 256
        %v235 = vpop.permute.xlu0 %234
        %v238 = vunpack.c.l.s4 839922192
        %v239 = vunpack.c.0.s8 %v238
        %v240 = vlaneseq
        %v241 = vshrl.u32 %v240, 7
        %v242 = vsub.s32 %v239, %v241
        %v243 = vrot.slane %v235, %v242
        %v245 = vmul.f32 %v227, %v243
        %v247 = vcombine.high %v245, %v245
        %vm249 = vcmask 1043456
        %v250 = vsel %vm249, %v245, 0.0
        %v251 = vrot.slane %v250, 4
        %v252 = vadd.f32 %v250, %v251
        %v253 = vrot.slane %v252, 2
        %v254 = vadd.f32 %v252, %v253
        %v255 = vrot.slane %v254, 1
        %v256 = vadd.f32 %v254, %v255
        %v257 = vsel %vm249, %v247, 0.0
        %v258 = vrot.slane %v257, 4
        %v259 = vadd.f32 %v257, %v258
        %v260 = vrot.slane %v259, 2
        %v261 = vadd.f32 %v259, %v260
        %v262 = vrot.slane %v261, 1
        %v263 = vadd.f32 %v261, %v262
        %v266 = vcombine.low %v256, %v263
        %v268 = vunpack.c.l.s4 1966171168
        %v269 = vunpack.c.0.s8 %v268
        %v270 = vlaneseq
        %v271 = vshrl.u32 %v270, 7
        %v272 = vsub.s32 %v269, %v271
        %v273 = vrot.slane %v266, %v272
        %v275 = vunpack.c.l.s4 1966171168
        %v276 = vunpack.c.0.s8 %v275
        %v277 = vlaneseq
        %v278 = vshrl.u32 %v277, 7
        %v279 = vsub.s32 %v276, %v278
        %v280 = vrot.slane %v273, %v279
        %v282 = vadd.f32 %v228, %v280
        %v283 = vlaneseq
        %vm284 = vcmp.ge.s32.totalorder %v283, 0
        %vm285 = vcmp.lt.s32.totalorder %v283, 256
        %vm286 = vmand %vm284, %vm285
        %287 = vst.msk [vmem:[#allocation2] sm:$0x3] %vm286, %v282
        // Predicated region
        $region41: #{tpu_custom_call.1} parent=27 // pred_check
          %p288 = pneg %p211
        $region42: #{tpu_custom_call.1} parent=27 // pred_check_branch
          %290 = sbr.rel (%p288) target = $region44
        $region43: #{tpu_custom_call.1} parent=27 // pred_region
          %v291 = vld [vmem:[#allocation2] sm:$0x3]
          %292 = vst.msk [vmem:[%s208] sm:$0x3] %vm286, %v291
        $region44: #{tpu_custom_call.1} parent=27 // pred_fallthru
          _
        %s293 = sand.u32 %s105, 1
        %s294 = scalar_lea.sflag [#allocation5], %s293
        %s295 = sand.u32 %s105, 1
        %s296 = smul.addr %s295, 2
        %s297 = scalar_lea.vmem [#allocation8], %s296
        // Predicated region
        $region45: #{tpu_custom_call.1} parent=27 // pred_check
          %p298 = pneg %p115
        $region46: #{tpu_custom_call.1} parent=27 // pred_check_branch
          %300 = sbr.rel (%p298) target = $region48
        $region47: #{tpu_custom_call.1} parent=27 // pred_region
          %s301 = smul.u32 2, %s26
          %s303 = ssub.s32 32, 32
          %304 = vsyncadd %s294, %s303
          %s305 = smul.addr %s25, 2
          %s306 = sadd.s32 %s301, %s305
          %s307 = smul.addr %s306, 16
          %s308 = scalar_lea.hbm %s2, %s307
          %s310 = sshll.u32 %s297, 4
          %s311 = int_to_ptr.vmem [resolvable:$true] %s310
          %313 = dma.vmem_to_hbm [thread:$0]  %s311, 32, %s308, %s294
        $region48: #{tpu_custom_call.1} parent=27 // pred_fallthru
          _
      $region28: #{tpu_custom_call.1} parent=5 // pred_fallthru
        _
      %p314 = scmp.le.s32.totalorder 2, %s15
      // Predicated region
      $region49: #{tpu_custom_call.1} parent=5 // pred_check
        %p315 = pneg %p314
      $region50: #{tpu_custom_call.1} parent=5 // pred_check_branch
        %317 = sbr.rel (%p315) target = $region52
      $region51: #{tpu_custom_call.1} parent=5 // pred_region
        %s318 = ssub.s32 %s15, 2
        // Predicated region
        $region53: #{tpu_custom_call.1} parent=51 // pred_check
          %p319 = pneg %p121
        $region54: #{tpu_custom_call.1} parent=51 // pred_check_branch
          %321 = sbr.rel (%p319) target = $region56
        $region55: #{tpu_custom_call.1} parent=51 // pred_region
          %s322 = sand.u32 %s106, 1
          %s323 = scalar_lea.sflag [#allocation5], %s322
          %s324 = sand.u32 %s106, 1
          %s325 = smul.addr %s324, 2
          %s326 = scalar_lea.vmem [#allocation8], %s325
          %327 = dma.done %s323, 32
        $region56: #{tpu_custom_call.1} parent=51 // pred_fallthru
          _
      $region52: #{tpu_custom_call.1} parent=5 // pred_fallthru
        _
    $region6: #{tpu_custom_call.1} parent=1 // loop_footer
      %s19 = sadd.s32 1, %s15
    $region7: #{tpu_custom_call.1} parent=1 // loop_footer_branch
      %14 = sbr.rel target = $region3
    $region8: #{tpu_custom_call.1} parent=1 // loop_exit
      _
    %328 = vsyncpa [#allocation4], 1
    %s329 = scalar_lea.sflag [#allocation4], 1
    %330 = vsyncpa %s329, 1
    %331 = vsyncpa [#allocation7], 1
    %s332 = scalar_lea.sflag [#allocation7], 1
    %333 = vsyncpa %s332, 1
    %334 = vsyncpa [#allocation5], 1
    %s335 = scalar_lea.sflag [#allocation5], 1
    %336 = vsyncpa %s335, 1

</llo_original>
